<compile_context>
chip_gen: v7x
topology: tpu7x:2x2x1
jax: 0.10.0
libtpu: 0.0.40
codegen_flags: <defaults>
</compile_context>

<pallas_src>
import jax
import jax.numpy as jnp
from jax.experimental import pallas as pl
from jax.experimental.pallas import tpu as pltpu


def _round_up(x, m):
    return (x + m - 1) // m * m


def _maybe_pad(x, rows_to, cols_to=None):
    """Zero-pad only when needed (skip the extra HBM pass when aligned)."""
    r, c = x.shape
    pr = rows_to - r
    pc = 0 if cols_to is None else cols_to - c
    if pr == 0 and pc == 0:
        return x
    return jnp.pad(x, ((0, pr), (0, pc)))


def conformity_kernel(cand_ref, hist_ref, ukl_ref, wh_ref, wu_ref, scal_ref,
                      out_ref, uconf_ref):
    """Grid = (batch tile i, candidate tile j); j innermost / sequential."""
    cc = scal_ref[2]       # candidate_conformity (scalar Parameter)
    alpha = scal_ref[3]    # hyper_alpha

    # Per-batch-tile [tb, 1] user-conformity path: compute once (j == 0) and
    # cache in VMEM scratch for all candidate tiles of this batch tile.
    @pl.when(pl.program_id(1) == 0)
    def _():
        hist = hist_ref[...]                                   # [tb, H]
        ukl = ukl_ref[...]                                     # [tb, E]
        bh = scal_ref[0]
        bu = scal_ref[1]

        # news_side = sigmoid(Linear_his(history_ctr)) -> [tb, 1]
        # VPU multiply + lane (XLU) reduction; MXU would be wasted on K=H,N=1.
        news_logit = jnp.sum(hist * wh_ref[...], axis=-1, keepdims=True) + bh
        news_side = jax.nn.sigmoid(news_logit)

        # user_weight = sigmoid(Linear_user(user_kl)) -> [tb, 1]
        user_logit = jnp.sum(ukl * wu_ref[...], axis=-1, keepdims=True) + bu
        user_weight = jax.nn.sigmoid(user_logit)

        # user_side = mean(user_weight * user_kl, -1, keepdim) -> [tb, 1]
        user_side = jnp.mean(user_weight * ukl, axis=-1, keepdims=True)

        weighted_info = user_side + (1.0 - user_weight) * news_side
        denom = 1.0 + weighted_info
        # EUP approximate reciprocal (free slot) + one Newton step on the tiny
        # [tb,1] vector to recover f32 accuracy.
        inv = pl.reciprocal(denom, approx=True)
        inv = inv * (2.0 - denom * inv)
        user_conf = news_side * inv

        uconf_ref[...] = alpha * user_conf                     # [tb, 1]

    # Steady state: two VPU ops per vreg (mul + add with sublane-broadcast).
    out_ref[...] = cc * cand_ref[...] + uconf_ref[...]


def init_params(key, his_size, emb_size):
    k1, k2, k3, k4, k5 = jax.random.split(key, 5)
    # his_conformity: Linear(his_size -> 1); weight [1, his_size], bias [1]
    wh = jax.random.normal(k1, (1, his_size), jnp.float32) * 0.1
    bh = jax.random.normal(k2, (1,), jnp.float32) * 0.1
    # users_conformity: Linear(emb_size -> 1); weight [1, emb_size], bias [1]
    wu = jax.random.normal(k3, (1, emb_size), jnp.float32) * 0.1
    bu = jax.random.normal(k4, (1,), jnp.float32) * 0.1
    # candidate_conformity: scalar parameter, normal init
    cc = jax.random.normal(k5, (1,), jnp.float32)
    return wh, bh, wu, bu, cc


def conformity_cal(candidate_ctr, history_ctr, user_kl, params,
                   hyper_alpha=1.0, tb=512, tc=512):
    """Full branch of ConformtyCal.forward."""
    B, C = candidate_ctr.shape
    H = history_ctr.shape[1]
    E = user_kl.shape[1]
    wh, bh, wu, bu, cc = params

    # Tile sizes: batch tile multiple of 8 (sublanes), candidate tile multiple
    # of 128 (lane-dense output => unmasked full-lane stores).
    tb = min(tb, _round_up(B, 8))
    tc = min(tc, _round_up(C, 128))
    B_pad = _round_up(B, tb)
    C_pad = _round_up(C, tc)

    f32 = jnp.float32
    cand_p = _maybe_pad(candidate_ctr.astype(f32), B_pad, C_pad)
    hist_p = _maybe_pad(history_ctr.astype(f32), B_pad)
    ukl_p = _maybe_pad(user_kl.astype(f32), B_pad)

    # Single SMEM row of scalars: [bh, bu, candidate_conformity, hyper_alpha].
    scal = jnp.concatenate(
        [bh.astype(f32), bu.astype(f32), cc.astype(f32),
         jnp.asarray([hyper_alpha], f32)])

    grid = (B_pad // tb, C_pad // tc)

    out_p = pl.pallas_call(
        conformity_kernel,
        out_shape=jax.ShapeDtypeStruct((B_pad, C_pad), f32),
        grid=grid,
        in_specs=[
            pl.BlockSpec((tb, tc), lambda i, j: (i, j)),        # candidate_ctr
            pl.BlockSpec((tb, H), lambda i, j: (i, 0)),         # history_ctr (resident over j)
            pl.BlockSpec((tb, E), lambda i, j: (i, 0)),         # user_kl     (resident over j)
            pl.BlockSpec((1, H), lambda i, j: (0, 0)),          # wh (fetched once)
            pl.BlockSpec((1, E), lambda i, j: (0, 0)),          # wu (fetched once)
            pl.BlockSpec(memory_space=pltpu.MemorySpace.SMEM),  # [bh, bu, cc, alpha]
        ],
        out_specs=pl.BlockSpec((tb, tc), lambda i, j: (i, j)),
        scratch_shapes=[pltpu.VMEM((tb, 1), f32)],              # cached alpha*user_conf
        compiler_params=pltpu.CompilerParams(
            dimension_semantics=("parallel", "arbitrary")),
    )(cand_p, hist_p, ukl_p, wh.astype(f32), wu.astype(f32), scal)

    if B_pad == B and C_pad == C:
        return out_p
    return out_p[:B, :C]


def conformity_ref(candidate_ctr, history_ctr, user_kl, params, hyper_alpha=1.0):
    """Pure-JAX reference mirroring the PyTorch forward (full branch)."""
    wh, bh, wu, bu, cc = params
    candidate_conf = cc[0] * candidate_ctr
    news_side = jax.nn.sigmoid(history_ctr @ wh.T + bh)          # [B, 1]
    user_weight = jax.nn.sigmoid(user_kl @ wu.T + bu)            # [B, 1]
    user_side = jnp.mean(user_weight * user_kl, axis=-1, keepdims=True)
    weighted_info = user_side + (1.0 - user_weight) * news_side
    user_conf = news_side / (1.0 + weighted_info)
    return candidate_conf + hyper_alpha * user_conf


if __name__ == "__main__":
    key = jax.random.PRNGKey(0)

    # Test 1: shapes consistent with the module (batch=8, candidate_num=16,
    # his_size=8, emb_size=2).  C=16 is padded to 128 lanes inside the wrapper.
    B, C, H, E = 8, 16, 8, 2
    kp, k1, k2, k3, key = jax.random.split(key, 5)
    params = init_params(kp, his_size=H, emb_size=E)
    candidate_ctr = jax.random.uniform(k1, (B, C), jnp.float32)
    history_ctr = jax.random.uniform(k2, (B, H), jnp.float32)
    user_kl = jax.random.uniform(k3, (B, E), jnp.float32)

    out = conformity_cal(candidate_ctr, history_ctr, user_kl, params, 1.0)
    out = jax.block_until_ready(out)
    ref = conformity_ref(candidate_ctr, history_ctr, user_kl, params, 1.0)
    assert out.shape == (B, C)
    assert jnp.allclose(out, ref, atol=1e-4, rtol=1e-4)

    # Test 2: exercises padding of both axes and a multi-step candidate grid
    # (the j>0 tiles reuse the hoisted user-conformity scratch).
    B2, C2 = 5, 300
    k4, k5, k6 = jax.random.split(key, 3)
    candidate_ctr2 = jax.random.uniform(k4, (B2, C2), jnp.float32)
    history_ctr2 = jax.random.uniform(k5, (B2, H), jnp.float32)
    user_kl2 = jax.random.uniform(k6, (B2, E), jnp.float32)

    out2 = conformity_cal(candidate_ctr2, history_ctr2, user_kl2, params, 0.7)
    out2 = jax.block_until_ready(out2)
    ref2 = conformity_ref(candidate_ctr2, history_ctr2, user_kl2, params, 0.7)
    assert out2.shape == (B2, C2)
    assert jnp.allclose(out2, ref2, atol=1e-4, rtol=1e-4)

    # Test 3: fully aligned shapes (no padding path, multi-tile both axes).
    B3, C3 = 1024, 1024
    k7, k8, k9 = jax.random.split(jax.random.PRNGKey(1), 3)
    candidate_ctr3 = jax.random.uniform(k7, (B3, C3), jnp.float32)
    history_ctr3 = jax.random.uniform(k8, (B3, H), jnp.float32)
    user_kl3 = jax.random.uniform(k9, (B3, E), jnp.float32)

    out3 = conformity_cal(candidate_ctr3, history_ctr3, user_kl3, params, 1.3)
    out3 = jax.block_until_ready(out3)
    ref3 = conformity_ref(candidate_ctr3, history_ctr3, user_kl3, params, 1.3)
    assert out3.shape == (B3, C3)
    assert jnp.allclose(out3, ref3, atol=1e-4, rtol=1e-4)

    print("KERNEL_OK")
</pallas_src>

<mosaic_0001>
module attributes {stable_mosaic.version = 11 : i64} {
  func.func @conformity_kernel(%arg0: i32, %arg1: i32, %arg2: memref<8x128xf32, #tpu.memory_space<vmem>>, %arg3: memref<8x8xf32, #tpu.memory_space<vmem>>, %arg4: memref<8x2xf32, #tpu.memory_space<vmem>>, %arg5: memref<1x8xf32, #tpu.memory_space<vmem>>, %arg6: memref<1x2xf32, #tpu.memory_space<vmem>>, %arg7: memref<4xf32, #tpu.memory_space<smem>>, %arg8: memref<8x128xf32, #tpu.memory_space<vmem>>, %arg9: memref<8x1xf32, #tpu.memory_space<vmem>>) attributes {dimension_semantics = [#tpu.dimension_semantics<parallel>, #tpu.dimension_semantics<arbitrary>], iteration_bounds = array<i64: 1, 1>, scalar_prefetch = 0 : i64, scratch_operands = 1 : i64, tpu.core_type = #tpu.core_type<tc>, window_params = [{transform_indices = @transform_0, window_bounds = array<i64: 8, 128>}, {transform_indices = @transform_1, window_bounds = array<i64: 8, 8>}, {transform_indices = @transform_2, window_bounds = array<i64: 8, 2>}, {pipeline_mode = #tpu.pipeline_mode<synchronous>, transform_indices = @transform_3, window_bounds = array<i64: 1, 8>}, {pipeline_mode = #tpu.pipeline_mode<synchronous>, transform_indices = @transform_4, window_bounds = array<i64: 1, 2>}, {transform_indices = @transform_5, window_bounds = array<i64: 4>}, {transform_indices = @transform_6, window_bounds = array<i64: 8, 128>}]} {
    %c2 = arith.constant 2 : index
    %0 = memref.load %arg7[%c2] : memref<4xf32, #tpu.memory_space<smem>>
    %c3 = arith.constant 3 : index
    %1 = memref.load %arg7[%c3] : memref<4xf32, #tpu.memory_space<smem>>
    %c0_i32 = arith.constant 0 : i32
    %2 = arith.cmpi eq, %arg1, %c0_i32 : i32
    %3 = arith.extui %2 : i1 to i32
    %c0_i32_0 = arith.constant 0 : i32
    %4 = arith.cmpi ne, %3, %c0_i32_0 : i32
    scf.if %4 {
      %c0_6 = arith.constant 0 : index
      %c0_7 = arith.constant 0 : index
      %12 = vector.load %arg3[%c0_6, %c0_7] : memref<8x8xf32, #tpu.memory_space<vmem>>, vector<8x8xf32>
      %c0_8 = arith.constant 0 : index
      %c0_9 = arith.constant 0 : index
      %13 = vector.load %arg4[%c0_8, %c0_9] : memref<8x2xf32, #tpu.memory_space<vmem>>, vector<8x2xf32>
      %c0_10 = arith.constant 0 : index
      %14 = memref.load %arg7[%c0_10] : memref<4xf32, #tpu.memory_space<smem>>
      %c1 = arith.constant 1 : index
      %15 = memref.load %arg7[%c1] : memref<4xf32, #tpu.memory_space<smem>>
      %c0_11 = arith.constant 0 : index
      %c0_12 = arith.constant 0 : index
      %16 = vector.load %arg5[%c0_11, %c0_12] : memref<1x8xf32, #tpu.memory_space<vmem>>, vector<1x8xf32>
      %17 = vector.broadcast %16 : vector<1x8xf32> to vector<8x8xf32>
      %18 = arith.mulf %12, %17 : vector<8x8xf32>
      %cst = arith.constant dense<0.000000e+00> : vector<8xf32>
      %19 = vector.multi_reduction <add>, %18, %cst [1] : vector<8x8xf32> to vector<8xf32>
      %20 = vector.shape_cast %19 : vector<8xf32> to vector<8x1xf32>
      %21 = vector.broadcast %14 : f32 to vector<8x1xf32>
      %22 = arith.addf %20, %21 : vector<8x1xf32>
      %23 = arith.negf %22 : vector<8x1xf32>
      %24 = math.exp %23 : vector<8x1xf32>
      %cst_13 = arith.constant 1.000000e+00 : f32
      %25 = vector.broadcast %cst_13 : f32 to vector<8x1xf32>
      %26 = arith.addf %25, %24 : vector<8x1xf32>
      %27 = arith.divf %25, %26 : vector<8x1xf32>
      %c0_14 = arith.constant 0 : index
      %c0_15 = arith.constant 0 : index
      %28 = vector.load %arg6[%c0_14, %c0_15] : memref<1x2xf32, #tpu.memory_space<vmem>>, vector<1x2xf32>
      %29 = vector.broadcast %28 : vector<1x2xf32> to vector<8x2xf32>
      %30 = arith.mulf %13, %29 : vector<8x2xf32>
      %cst_16 = arith.constant dense<0.000000e+00> : vector<8xf32>
      %31 = vector.multi_reduction <add>, %30, %cst_16 [1] : vector<8x2xf32> to vector<8xf32>
      %32 = vector.shape_cast %31 : vector<8xf32> to vector<8x1xf32>
      %33 = vector.broadcast %15 : f32 to vector<8x1xf32>
      %34 = arith.addf %32, %33 : vector<8x1xf32>
      %35 = arith.negf %34 : vector<8x1xf32>
      %36 = math.exp %35 : vector<8x1xf32>
      %cst_17 = arith.constant 1.000000e+00 : f32
      %37 = vector.broadcast %cst_17 : f32 to vector<8x1xf32>
      %38 = arith.addf %37, %36 : vector<8x1xf32>
      %39 = arith.divf %37, %38 : vector<8x1xf32>
      %40 = vector.broadcast %39 : vector<8x1xf32> to vector<8x2xf32>
      %41 = arith.mulf %40, %13 : vector<8x2xf32>
      %cst_18 = arith.constant dense<0.000000e+00> : vector<8xf32>
      %42 = vector.multi_reduction <add>, %41, %cst_18 [1] : vector<8x2xf32> to vector<8xf32>
      %43 = vector.shape_cast %42 : vector<8xf32> to vector<8x1xf32>
      %cst_19 = arith.constant 2.000000e+00 : f32
      %44 = vector.broadcast %cst_19 : f32 to vector<8x1xf32>
      %45 = arith.divf %43, %44 : vector<8x1xf32>
      %cst_20 = arith.constant 1.000000e+00 : f32
      %46 = vector.broadcast %cst_20 : f32 to vector<8x1xf32>
      %47 = arith.subf %46, %39 : vector<8x1xf32>
      %48 = arith.mulf %47, %27 : vector<8x1xf32>
      %49 = arith.addf %45, %48 : vector<8x1xf32>
      %cst_21 = arith.constant 1.000000e+00 : f32
      %50 = vector.broadcast %cst_21 : f32 to vector<8x1xf32>
      %51 = arith.addf %50, %49 : vector<8x1xf32>
      %52 = tpu.reciprocal %51 {approx = true} : vector<8x1xf32> -> vector<8x1xf32>
      %53 = arith.mulf %51, %52 : vector<8x1xf32>
      %cst_22 = arith.constant 2.000000e+00 : f32
      %54 = vector.broadcast %cst_22 : f32 to vector<8x1xf32>
      %55 = arith.subf %54, %53 : vector<8x1xf32>
      %56 = arith.mulf %52, %55 : vector<8x1xf32>
      %57 = arith.mulf %27, %56 : vector<8x1xf32>
      %58 = vector.broadcast %1 : f32 to vector<8x1xf32>
      %59 = arith.mulf %58, %57 : vector<8x1xf32>
      %c0_23 = arith.constant 0 : index
      %c0_24 = arith.constant 0 : index
      %60 = vector.load %arg9[%c0_23, %c0_24] : memref<8x1xf32, #tpu.memory_space<vmem>>, vector<8x1xf32>
      tpu.vector_store %arg9[%c0_23, %c0_24], %59 {strides = array<i32>} : memref<8x1xf32, #tpu.memory_space<vmem>>, vector<8x1xf32>,
    } else {
    }
    %c0 = arith.constant 0 : index
    %c0_1 = arith.constant 0 : index
    %5 = vector.load %arg2[%c0, %c0_1] : memref<8x128xf32, #tpu.memory_space<vmem>>, vector<8x128xf32>
    %6 = vector.broadcast %0 : f32 to vector<8x128xf32>
    %7 = arith.mulf %6, %5 : vector<8x128xf32>
    %c0_2 = arith.constant 0 : index
    %c0_3 = arith.constant 0 : index
    %8 = vector.load %arg9[%c0_2, %c0_3] : memref<8x1xf32, #tpu.memory_space<vmem>>, vector<8x1xf32>
    %9 = vector.broadcast %8 : vector<8x1xf32> to vector<8x128xf32>
    %10 = arith.addf %7, %9 : vector<8x128xf32>
    %c0_4 = arith.constant 0 : index
    %c0_5 = arith.constant 0 : index
    %11 = vector.load %arg8[%c0_4, %c0_5] : memref<8x128xf32, #tpu.memory_space<vmem>>, vector<8x128xf32>
    tpu.vector_store %arg8[%c0_4, %c0_5], %10 {strides = array<i32>} : memref<8x128xf32, #tpu.memory_space<vmem>>, vector<8x128xf32>,
    return
  }
  func.func @transform_0(%arg0: i32, %arg1: i32) -> (i32, i32) {
    %c0_i32 = arith.constant 0 : i32
    return %arg0, %arg1 : i32, i32
  }
  func.func @transform_1(%arg0: i32, %arg1: i32) -> (i32, i32) {
    %c0_i32 = arith.constant 0 : i32
    %c0_i32_0 = arith.constant 0 : i32
    return %arg0, %c0_i32 : i32, i32
  }
  func.func @transform_2(%arg0: i32, %arg1: i32) -> (i32, i32) {
    %c0_i32 = arith.constant 0 : i32
    %c0_i32_0 = arith.constant 0 : i32
    return %arg0, %c0_i32 : i32, i32
  }
  func.func @transform_3(%arg0: i32, %arg1: i32) -> (i32, i32) {
    %c0_i32 = arith.constant 0 : i32
    %c0_i32_0 = arith.constant 0 : i32
    %c0_i32_1 = arith.constant 0 : i32
    return %c0_i32, %c0_i32_0 : i32, i32
  }
  func.func @transform_4(%arg0: i32, %arg1: i32) -> (i32, i32) {
    %c0_i32 = arith.constant 0 : i32
    %c0_i32_0 = arith.constant 0 : i32
    %c0_i32_1 = arith.constant 0 : i32
    return %c0_i32, %c0_i32_0 : i32, i32
  }
  func.func @transform_5(%arg0: i32, %arg1: i32) -> i32 {
    %c0_i32 = arith.constant 0 : i32
    %c0_i32_0 = arith.constant 0 : i32
    return %c0_i32 : i32
  }
  func.func @transform_6(%arg0: i32, %arg1: i32) -> (i32, i32) {
    %c0_i32 = arith.constant 0 : i32
    return %arg0, %arg1 : i32, i32
  }
}

</mosaic_0001>

<llo_original>
// kernel: tpu_custom_call.1
$region0: #{tpu_custom_call.1}
  #allocation0 [shape = 'u32[]', space=smem, size = 0x4, offset = 0x4, fixed_abs, tag = 'smem constant byte address 0x4 - core index']
  #allocation1 [shape = 'u32[144,128]{1,0:T(1,128)}', space=vmem, size = 0x12000, scoped, tag = 'internal scratch']
  #allocation2 [shape = 'f32[8,1]{1,0:T(8,128)}', space=vmem, size = 0x1000, scoped, tag = 'scratch operand']
  %s0 = inlined_call_operand.vmem [shape: f32[8,128], index: 0, kind: input, shape index: {}]
  %s1 = inlined_call_operand.hbm [shape: f32[8,8], index: 1, kind: input, shape index: {}]
  %s2 = inlined_call_operand.vmem [shape: f32[8,2], index: 2, kind: input, shape index: {}]
  %s3 = inlined_call_operand.vmem [shape: f32[1,8], index: 3, kind: input, shape index: {}]
  %s4 = inlined_call_operand.vmem [shape: f32[1,2], index: 4, kind: input, shape index: {}]
  %s5 = inlined_call_operand.vmem [shape: f32[4], index: 5, kind: input, shape index: {}]
  %s6 = inlined_call_operand.hbm [shape: f32[8,128], index: 6, kind: output, shape index: {}]
  %s7 = sld [smem:[#allocation0]]
  $region46: #{tpu_custom_call.1} parent=0
    _
  %s9 = ssub.s32 1, %s7
  %s10 = scalar_select 0, %s9, %s7
  $region1: #{tpu_custom_call.1} parent=0
    #allocation3 [shape = 'u8[4096]{0}', space=vmem, size = 0x1000, scoped, tag = 'input window, operand 1, single buffered']
    #allocation4 [shape = 's32[1]{0}', space=sflag, size = 0x4, scoped, tag = 'scoped memory for tpu_custom_call.1']
    #allocation5 [shape = 's32[1]{0}', space=sflag, size = 0x4, scoped, tag = 'scoped memory for tpu_custom_call.1']
    #allocation6 [shape = 's32[1]{0}', space=sflag, size = 0x4, scoped, tag = 'scoped memory for tpu_custom_call.1']
    #allocation7 [shape = 'u8[512]{0}', space=smem, size = 0x200, scoped, tag = 'input window, operand 5, single buffered']
    #allocation8 [shape = 'u8[4096]{0}', space=vmem, size = 0x1000, scoped, tag = 'output window, operand 0, single buffered']
    %11 = vsyncpa [#allocation4], 0
    %12 = vsyncpa [#allocation6], 0
    %13 = vsyncpa [#allocation5], 0
    // Predicated region
    $region2: #{tpu_custom_call.1} parent=1 // pred_check
      _
    $region3: #{tpu_custom_call.1} parent=1 // pred_check_branch
      %15 = sbr.rel (0) target = $region5
    $region4: #{tpu_custom_call.1} parent=1 // pred_region
      _
    $region5: #{tpu_custom_call.1} parent=1 // pred_fallthru
      _
    // Predicated region
    $region6: #{tpu_custom_call.1} parent=1 // pred_check
      _
    $region7: #{tpu_custom_call.1} parent=1 // pred_check_branch
      %17 = sbr.rel (0) target = $region9
    $region8: #{tpu_custom_call.1} parent=1 // pred_region
      %s19 = ssub.s32 128, 128
      %20 = vsyncadd [#allocation4], %s19
      %s22 = sshll.u32 [#allocation3], 4
      %s23 = int_to_ptr.vmem [resolvable:$true] %s22
      %25 = dma.hbm_to_vmem [thread:$0]  %s1, 128, %s23, [#allocation4]
    $region9: #{tpu_custom_call.1} parent=1 // pred_fallthru
      _
    // Predicated region
    $region10: #{tpu_custom_call.1} parent=1 // pred_check
      _
    $region11: #{tpu_custom_call.1} parent=1 // pred_check_branch
      %27 = sbr.rel (0) target = $region13
    $region12: #{tpu_custom_call.1} parent=1 // pred_region
      _
    $region13: #{tpu_custom_call.1} parent=1 // pred_fallthru
      _
    // Predicated region
    $region14: #{tpu_custom_call.1} parent=1 // pred_check
      _
    $region15: #{tpu_custom_call.1} parent=1 // pred_check_branch
      %29 = sbr.rel (0) target = $region17
    $region16: #{tpu_custom_call.1} parent=1 // pred_region
      _
    $region17: #{tpu_custom_call.1} parent=1 // pred_fallthru
      _
    // Predicated region
    $region18: #{tpu_custom_call.1} parent=1 // pred_check
      _
    $region19: #{tpu_custom_call.1} parent=1 // pred_check_branch
      %31 = sbr.rel (0) target = $region21
    $region20: #{tpu_custom_call.1} parent=1 // pred_region
      _
    $region21: #{tpu_custom_call.1} parent=1 // pred_fallthru
      _
    // Predicated region
    $region22: #{tpu_custom_call.1} parent=1 // pred_check
      _
    $region23: #{tpu_custom_call.1} parent=1 // pred_check_branch
      %33 = sbr.rel (0) target = $region25
    $region24: #{tpu_custom_call.1} parent=1 // pred_region
      %s35 = ssub.s32 16, 16
      %36 = vsyncadd [#allocation6], %s35
      %s38 = sshll.u32 %s5, 4
      %s39 = int_to_ptr.vmem [resolvable:$true] %s38
      %41 = dma.vmem_to_smem %s39, 16, [#allocation7], [#allocation6]
    $region25: #{tpu_custom_call.1} parent=1 // pred_fallthru
      _
    // Predicated region
    $region26: #{tpu_custom_call.1} parent=1 // pred_check
      _
    $region27: #{tpu_custom_call.1} parent=1 // pred_check_branch
      %43 = sbr.rel (0) target = $region29
    $region28: #{tpu_custom_call.1} parent=1 // pred_region
      %44 = dma.done [#allocation4], 128
    $region29: #{tpu_custom_call.1} parent=1 // pred_fallthru
      _
    // Predicated region
    $region30: #{tpu_custom_call.1} parent=1 // pred_check
      _
    $region31: #{tpu_custom_call.1} parent=1 // pred_check_branch
      %46 = sbr.rel (0) target = $region33
    $region32: #{tpu_custom_call.1} parent=1 // pred_region
      %47 = dma.done [#allocation6], 16
    $region33: #{tpu_custom_call.1} parent=1 // pred_fallthru
      _
    %48 = sfence
    %s49 = sld [smem:[#allocation7 + $0x2]]
    %s50 = sld [smem:[#allocation7 + $0x3]]
    %p51 = scmp.eq.s32.totalorder 0, 0
    // Predicated region
    $region34: #{tpu_custom_call.1} parent=1 // pred_check
      %p52 = pneg %p51
    $region35: #{tpu_custom_call.1} parent=1 // pred_check_branch
      %54 = sbr.rel (%p52) target = $region37
    $region36: #{tpu_custom_call.1} parent=1 // pred_region
      %v55 = vld [vmem:[#allocation3] sm:$0xff]
      %v56 = vld [vmem:[%s2] sm:$0xff]
      %s57 = sld [smem:[#allocation7]]
      %s58 = sld [smem:[#allocation7 + $0x1]]
      %v59 = vld [vmem:[%s3] sm:$0x1]
      %v61 = vlaneseq
      %v62 = vshrl.u32 %v61, 7
      %v63 = vsub.s32 0, %v62
      %v64 = vrot.slane %v59, %v63
      %v66 = vmul.f32 %v55, %v64
      %vm67 = vcmask 64512
      %v68 = vsel %vm67, %v66, 0.0
      %69 = vadd.xlane.f32.xlu0 %v68
      %v70 = vpop.xlane.xlu0 %69
      %v71 = vstv %s57
      %v72 = vadd.f32 %v70, %v71
      %v73 = vxor.u32 %v72, 2147483648
      %v74 = vmul.f32 %v73, 1.442695
      %v75 = vpow.pop %v74
      %v76 = vadd.f32 %v75, 1.0
      %v77 = vrcp.pop %v76
      %v78 = vmul.f32 1.0, %v77
      %v79 = vld [vmem:[%s4] sm:$0x1]
      %v81 = vlaneseq
      %v82 = vshrl.u32 %v81, 7
      %v83 = vsub.s32 0, %v82
      %v84 = vrot.slane %v79, %v83
      %v86 = vmul.f32 %v56, %v84
      %vm87 = vcmask 15360
      %v88 = vsel %vm87, %v86, 0.0
      %89 = vadd.xlane.f32.xlu0 %v88
      %v90 = vpop.xlane.xlu0 %89
      %v91 = vstv %s58
      %v92 = vadd.f32 %v90, %v91
      %v93 = vxor.u32 %v92, 2147483648
      %v94 = vmul.f32 %v93, 1.442695
      %v95 = vpow.pop %v94
      %v96 = vadd.f32 %v95, 1.0
      %v97 = vrcp.pop %v96
      %v98 = vmul.f32 1.0, %v97
      %v99 = vmul.f32 %v98, %v56
      %v100 = vsel %vm87, %v99, 0.0
      %101 = vadd.xlane.f32.xlu0 %v100
      %v102 = vpop.xlane.xlu0 %101
      %v103 = vrcp.pop 2.0
      %v104 = vmul.f32 %v102, %v103
      %v105 = vsub.f32 1.0, %v98
      %v106 = vmul.f32 %v105, %v78
      %v107 = vadd.f32 %v104, %v106
      %v108 = vadd.f32 %v107, 1.0
      %v109 = vrcp.pop %v108
      %v110 = vmul.f32 %v108, %v109
      %v111 = vsub.f32 2.0, %v110
      %v112 = vmul.f32 %v109, %v111
      %v113 = vmul.f32 %v78, %v112
      %v114 = vstv %s50
      %v115 = vmul.f32 %v114, %v113
      %vm116 = vcmask 7168
      %117 = vst.msk [vmem:[#allocation2] sm:$0xff] %vm116, %v115
    $region37: #{tpu_custom_call.1} parent=1 // pred_fallthru
      _
    %v118 = vld [vmem:[%s0] sm:$0xff]
    %v119 = vstv %s49
    %v120 = vmul.f32 %v119, %v118
    %v121 = vld [vmem:[#allocation2] sm:$0xff]
    %123 = vset.pattern.permute.xlu0 0
    %124 = vperm.xlu0 %123, %v121
    %v125 = vpop.permute.xlu0 %124
    %v127 = vadd.f32 %v120, %v125
    %128 = vst [vmem:[#allocation8] sm:$0xff] %v127
    // Predicated region
    $region38: #{tpu_custom_call.1} parent=1 // pred_check
      _
    $region39: #{tpu_custom_call.1} parent=1 // pred_check_branch
      %130 = sbr.rel (0) target = $region41
    $region40: #{tpu_custom_call.1} parent=1 // pred_region
      %s132 = ssub.s32 128, 128
      %133 = vsyncadd [#allocation5], %s132
      %s135 = sshll.u32 [#allocation8], 4
      %s136 = int_to_ptr.vmem [resolvable:$true] %s135
      %138 = dma.vmem_to_hbm [thread:$0]  %s136, 128, %s6, [#allocation5]
    $region41: #{tpu_custom_call.1} parent=1 // pred_fallthru
      _
    // Predicated region
    $region42: #{tpu_custom_call.1} parent=1 // pred_check
      _
    $region43: #{tpu_custom_call.1} parent=1 // pred_check_branch
      %140 = sbr.rel (0) target = $region45
    $region44: #{tpu_custom_call.1} parent=1 // pred_region
      %141 = dma.done [#allocation5], 128
    $region45: #{tpu_custom_call.1} parent=1 // pred_fallthru
      _
    %142 = vsyncpa [#allocation4], 1
    %143 = vsyncpa [#allocation5], 1
    %144 = vsyncpa [#allocation6], 1

</llo_original>
